<compile_context>
chip_gen: v5e
topology: v5e:2x2
jax: 0.10.0
libtpu: 0.0.40
codegen_flags: <defaults>
</compile_context>

<pallas_src>
import functools

import jax
import jax.numpy as jnp
import numpy as np
from jax import lax
from jax.experimental import pallas as pl
from jax.experimental.pallas import tpu as pltpu

_LANE = 128      # lane width
_CHUNK = 256     # lanes processed per in-kernel fori_loop iteration


def _round_up(n, m):
    return ((n + m - 1) // m) * m


def _cdiv(n, m):
    return (n + m - 1) // m


def _mlp_kernel(x_ref, w1_ref, b1_ref, w2t_ref, b2_ref, o_ref, *, chunk):
    # x_ref:   (4,  bb)  batch tile, batch on lanes
    # w1_ref:  (16, 4)   fc1.weight (out, in)      b1_ref:  (16, 1)
    # w2t_ref: (16, 2)   fc2.weight^T (in, out)    b2_ref:  (2, 1)
    # o_ref:   (2,  bb)
    bb = x_ref.shape[-1]
    n_chunks = bb // chunk

    # ---- Per-grid-step prologue: lane-broadcast the parameters once and keep
    # them live across the chunk loop (cost amortized over bb/chunk chunks). ----
    w1c = [jnp.broadcast_to(w1_ref[:, k:k + 1], (16, chunk)) for k in range(4)]
    b1b = jnp.broadcast_to(b1_ref[...], (16, chunk))
    w2b = [jnp.broadcast_to(w2t_ref[:, o:o + 1], (16, chunk)) for o in range(2)]
    b2b = jnp.broadcast_to(b2_ref[...], (2, chunk))

    def body(c, carry):
        start = pl.multiple_of(c * chunk, chunk)
        xc = x_ref[:, pl.ds(start, chunk)]                       # (4, chunk)

        # fc1 + ReLU:  h[j, l] = relu(b1[j] + sum_k w1[j, k] * x[k, l])
        # K=4 contraction as 4 VPU broadcast-FMAs on a (16, chunk) tile.
        # NOTE: a stride-0 sublane-broadcast load
        #   x_ref[pl.ds(k, 16, stride=0), pl.ds(start, chunk)]
        # would move this row broadcast onto the vld slot; kept as
        # jnp.broadcast_to here for lowering safety.
        h = b1b
        for k in range(4):
            xk = jnp.broadcast_to(xc[k:k + 1, :], (16, chunk))
            h = h + w1c[k] * xk
        h = jnp.maximum(h, 0.0)

        # fc2:  y[o, l] = b2[o] + sum_j w2[o, j] * h[j, l]
        # Elementwise multiply + cross-sublane (XLU) reduction instead of 16
        # quarter-occupied VALU FMAs.
        y0 = jnp.sum(w2b[0] * h, axis=0, keepdims=True)          # (1, chunk)
        y1 = jnp.sum(w2b[1] * h, axis=0, keepdims=True)          # (1, chunk)
        y = jnp.concatenate([y0, y1], axis=0) + b2b              # (2, chunk)

        o_ref[:, pl.ds(start, chunk)] = y.astype(o_ref.dtype)
        return carry

    lax.fori_loop(0, n_chunks, body, 0)


@functools.partial(jax.jit, static_argnames=("block_b", "min_steps"))
def snake_ai_forward_t(xT, w1, b1, w2, b2, *, block_b=32768, min_steps=2):
    """Optimized forward pass, feature-major layout.

    xT: (4, B) f32.  w1: (16, 4), b1: (16,), w2: (2, 16), b2: (2,) (torch layout).
    Returns (2, B) f32 == transpose of fc2(relu(fc1(x))) for x = xT.T.
    """
    B = xT.shape[-1]
    B128 = _round_up(B, _LANE)

    # Batch-tile derivation: bb is a multiple of _CHUNK, padding stays small
    # (derived from B, not rounded up to block_b), and we take >= min_steps
    # grid steps when the batch allows it so both v7x TensorCores get work.
    max_bb = max(_round_up(block_b, _CHUNK), _CHUNK)
    n_steps = max(min_steps, _cdiv(B128, max_bb))
    n_steps = min(n_steps, max(B128 // _CHUNK, 1))
    bb = _round_up(_cdiv(B128, n_steps), _CHUNK)
    grid = (_cdiv(B128, bb),)
    Bp = grid[0] * bb

    xTf = xT.astype(jnp.float32)
    if Bp != B:                                   # no-op when B already aligned
        xTf = jnp.pad(xTf, ((0, 0), (0, Bp - B)))
    w1f = w1.astype(jnp.float32).reshape(16, 4)
    b1c = b1.astype(jnp.float32).reshape(16, 1)
    w2t = w2.astype(jnp.float32).reshape(2, 16).T          # (16, 2)
    b2c = b2.astype(jnp.float32).reshape(2, 1)

    flops = 2 * Bp * (4 * 16 + 16 * 2)
    bytes_accessed = 4 * (4 * Bp + 2 * Bp + w1f.size + b1c.size + w2t.size + b2c.size)

    outT = pl.pallas_call(
        functools.partial(_mlp_kernel, chunk=_CHUNK),
        out_shape=jax.ShapeDtypeStruct((2, Bp), jnp.float32),
        grid_spec=pltpu.PrefetchScalarGridSpec(
            num_scalar_prefetch=0,
            grid=grid,
            in_specs=[
                pl.BlockSpec((4, bb), lambda i: (0, i)),    # x stream (pipelined)
                pl.BlockSpec((16, 4), lambda i: (0, 0)),    # params: VMEM-resident
                pl.BlockSpec((16, 1), lambda i: (0, 0)),
                pl.BlockSpec((16, 2), lambda i: (0, 0)),
                pl.BlockSpec((2, 1), lambda i: (0, 0)),
            ],
            out_specs=pl.BlockSpec((2, bb), lambda i: (0, i)),
        ),
        compiler_params=pltpu.CompilerParams(
            dimension_semantics=("parallel",)),
        cost_estimate=pl.CostEstimate(
            flops=flops, transcendentals=0, bytes_accessed=bytes_accessed),
    )(xTf, w1f, b1c, w2t, b2c)

    if Bp != B:
        outT = outT[:, :B]
    return outT                                             # (2, B)


def snake_ai_forward(x, w1, b1, w2, b2, **kwargs):
    """Module-compatible layout: x (B, 4) -> (B, 2).

    The two transposes here are exactly the extra HBM passes the optimized
    entry point avoids; prefer `snake_ai_forward_t` with feature-major
    activations when the caller controls the layout.
    """
    return snake_ai_forward_t(x.T, w1, b1, w2, b2, **kwargs).T


if __name__ == "__main__":
    key = jax.random.PRNGKey(0)
    kx, k1, k2, k3, k4 = jax.random.split(key, 5)

    # B not a multiple of 128: exercises tail padding, a 2-step grid and the
    # in-kernel chunk loop (bb=512 -> 2 chunks per step) -- still a small shape.
    B = 1000
    xT = jax.random.normal(kx, (4, B), jnp.float32)   # feature-major activations

    # PyTorch nn.Linear default init: U(-1/sqrt(fan_in), +1/sqrt(fan_in)),
    # weights in torch layout (out_features, in_features).
    lim1 = 1.0 / jnp.sqrt(4.0)
    lim2 = 1.0 / jnp.sqrt(16.0)
    w1 = jax.random.uniform(k1, (16, 4), jnp.float32, -lim1, lim1)
    b1 = jax.random.uniform(k2, (16,), jnp.float32, -lim1, lim1)
    w2 = jax.random.uniform(k3, (2, 16), jnp.float32, -lim2, lim2)
    b2 = jax.random.uniform(k4, (2,), jnp.float32, -lim2, lim2)

    outT = snake_ai_forward_t(xT, w1, b1, w2, b2)           # (2, B), optimized path
    outT = jax.block_until_ready(outT)
    out_bf = snake_ai_forward(xT.T, w1, b1, w2, b2)         # (B, 2), compat path
    out_bf = jax.block_until_ready(out_bf)

    # Reference (numpy, f32): torch.relu(x @ W1.T + b1) @ W2.T + b2
    x_np = np.asarray(xT).T
    ref = np.maximum(x_np @ np.asarray(w1).T + np.asarray(b1), 0.0) \
          @ np.asarray(w2).T + np.asarray(b2)

    assert outT.shape == (2, B)
    assert out_bf.shape == (B, 2)
    assert np.allclose(np.asarray(outT).T, ref, atol=1e-5, rtol=1e-5)
    assert np.allclose(np.asarray(out_bf), ref, atol=1e-5, rtol=1e-5)

    print("KERNEL_OK")
</pallas_src>

<mosaic_0001>
module attributes {stable_mosaic.version = 11 : i64} {
  func.func @_mlp_kernel(%arg0: i32, %arg1: memref<4x512xf32, #tpu.memory_space<vmem>>, %arg2: memref<16x4xf32, #tpu.memory_space<vmem>>, %arg3: memref<16x1xf32, #tpu.memory_space<vmem>>, %arg4: memref<16x2xf32, #tpu.memory_space<vmem>>, %arg5: memref<2x1xf32, #tpu.memory_space<vmem>>, %arg6: memref<2x512xf32, #tpu.memory_space<vmem>>) attributes {dimension_semantics = [#tpu.dimension_semantics<parallel>], iteration_bounds = array<i64: 2>, scalar_prefetch = 0 : i64, scratch_operands = 0 : i64, tpu.core_type = #tpu.core_type<tc>, window_params = [{transform_indices = @transform_0, window_bounds = array<i64: 4, 512>}, {pipeline_mode = #tpu.pipeline_mode<synchronous>, transform_indices = @transform_1, window_bounds = array<i64: 16, 4>}, {pipeline_mode = #tpu.pipeline_mode<synchronous>, transform_indices = @transform_2, window_bounds = array<i64: 16, 1>}, {pipeline_mode = #tpu.pipeline_mode<synchronous>, transform_indices = @transform_3, window_bounds = array<i64: 16, 2>}, {pipeline_mode = #tpu.pipeline_mode<synchronous>, transform_indices = @transform_4, window_bounds = array<i64: 2, 1>}, {transform_indices = @transform_5, window_bounds = array<i64: 2, 512>}]} {
    %c0 = arith.constant 0 : index
    %c0_0 = arith.constant 0 : index
    %0 = vector.load %arg2[%c0, %c0_0] : memref<16x4xf32, #tpu.memory_space<vmem>>, vector<16x1xf32>
    %1 = vector.shape_cast %0 : vector<16x1xf32> to vector<16x1xf32>
    %2 = vector.broadcast %1 : vector<16x1xf32> to vector<16x256xf32>
    %c0_1 = arith.constant 0 : index
    %c1 = arith.constant 1 : index
    %3 = vector.load %arg2[%c0_1, %c1] : memref<16x4xf32, #tpu.memory_space<vmem>>, vector<16x1xf32>
    %4 = vector.shape_cast %3 : vector<16x1xf32> to vector<16x1xf32>
    %5 = vector.broadcast %4 : vector<16x1xf32> to vector<16x256xf32>
    %c0_2 = arith.constant 0 : index
    %c2 = arith.constant 2 : index
    %6 = vector.load %arg2[%c0_2, %c2] : memref<16x4xf32, #tpu.memory_space<vmem>>, vector<16x1xf32>
    %7 = vector.shape_cast %6 : vector<16x1xf32> to vector<16x1xf32>
    %8 = vector.broadcast %7 : vector<16x1xf32> to vector<16x256xf32>
    %c0_3 = arith.constant 0 : index
    %c3 = arith.constant 3 : index
    %9 = vector.load %arg2[%c0_3, %c3] : memref<16x4xf32, #tpu.memory_space<vmem>>, vector<16x1xf32>
    %10 = vector.shape_cast %9 : vector<16x1xf32> to vector<16x1xf32>
    %11 = vector.broadcast %10 : vector<16x1xf32> to vector<16x256xf32>
    %c0_4 = arith.constant 0 : index
    %c0_5 = arith.constant 0 : index
    %12 = vector.load %arg3[%c0_4, %c0_5] : memref<16x1xf32, #tpu.memory_space<vmem>>, vector<16x1xf32>
    %13 = vector.shape_cast %12 : vector<16x1xf32> to vector<16x1xf32>
    %14 = vector.broadcast %13 : vector<16x1xf32> to vector<16x256xf32>
    %c0_6 = arith.constant 0 : index
    %c0_7 = arith.constant 0 : index
    %15 = vector.load %arg4[%c0_6, %c0_7] : memref<16x2xf32, #tpu.memory_space<vmem>>, vector<16x1xf32>
    %16 = vector.shape_cast %15 : vector<16x1xf32> to vector<16x1xf32>
    %17 = vector.broadcast %16 : vector<16x1xf32> to vector<16x256xf32>
    %c0_8 = arith.constant 0 : index
    %c1_9 = arith.constant 1 : index
    %18 = vector.load %arg4[%c0_8, %c1_9] : memref<16x2xf32, #tpu.memory_space<vmem>>, vector<16x1xf32>
    %19 = vector.shape_cast %18 : vector<16x1xf32> to vector<16x1xf32>
    %20 = vector.broadcast %19 : vector<16x1xf32> to vector<16x256xf32>
    %c0_10 = arith.constant 0 : index
    %c0_11 = arith.constant 0 : index
    %21 = vector.load %arg5[%c0_10, %c0_11] : memref<2x1xf32, #tpu.memory_space<vmem>>, vector<2x1xf32>
    %22 = vector.shape_cast %21 : vector<2x1xf32> to vector<2x1xf32>
    %23 = vector.broadcast %22 : vector<2x1xf32> to vector<2x256xf32>
    %c0_i32 = arith.constant 0 : i32
    %c2_i32 = arith.constant 2 : i32
    %24 = arith.addi %c0_i32, %c2_i32 : i32
    %c1_i32 = arith.constant 1 : i32
    scf.for %arg7 = %c0_i32 to %24 step %c1_i32  : i32 {
      %c256_i32 = arith.constant 256 : i32
      %25 = arith.muli %arg7, %c256_i32 : i32
      %26 = tpu.assume_multiple %25, 256 : i32
      %c0_13 = arith.constant 0 : index
      %27 = arith.index_cast %26 : i32 to index
      %28 = vector.load %arg1[%c0_13, %27] : memref<4x512xf32, #tpu.memory_space<vmem>>, vector<4x256xf32>
      %29 = vector.extract_strided_slice %28 {offsets = [0, 0], sizes = [1, 256], strides = [1, 1]} : vector<4x256xf32> to vector<1x256xf32>
      %30 = vector.shape_cast %29 : vector<1x256xf32> to vector<1x256xf32>
      %31 = vector.broadcast %30 : vector<1x256xf32> to vector<16x256xf32>
      %32 = arith.mulf %2, %31 : vector<16x256xf32>
      %33 = arith.addf %14, %32 : vector<16x256xf32>
      %34 = vector.extract_strided_slice %28 {offsets = [1, 0], sizes = [1, 256], strides = [1, 1]} : vector<4x256xf32> to vector<1x256xf32>
      %35 = vector.shape_cast %34 : vector<1x256xf32> to vector<1x256xf32>
      %36 = vector.broadcast %35 : vector<1x256xf32> to vector<16x256xf32>
      %37 = arith.mulf %5, %36 : vector<16x256xf32>
      %38 = arith.addf %33, %37 : vector<16x256xf32>
      %39 = vector.extract_strided_slice %28 {offsets = [2, 0], sizes = [1, 256], strides = [1, 1]} : vector<4x256xf32> to vector<1x256xf32>
      %40 = vector.shape_cast %39 : vector<1x256xf32> to vector<1x256xf32>
      %41 = vector.broadcast %40 : vector<1x256xf32> to vector<16x256xf32>
      %42 = arith.mulf %8, %41 : vector<16x256xf32>
      %43 = arith.addf %38, %42 : vector<16x256xf32>
      %44 = vector.extract_strided_slice %28 {offsets = [3, 0], sizes = [1, 256], strides = [1, 1]} : vector<4x256xf32> to vector<1x256xf32>
      %45 = vector.shape_cast %44 : vector<1x256xf32> to vector<1x256xf32>
      %46 = vector.broadcast %45 : vector<1x256xf32> to vector<16x256xf32>
      %47 = arith.mulf %11, %46 : vector<16x256xf32>
      %48 = arith.addf %43, %47 : vector<16x256xf32>
      %cst = arith.constant 0.000000e+00 : f32
      %49 = vector.broadcast %cst : f32 to vector<16x256xf32>
      %50 = arith.maximumf %48, %49 : vector<16x256xf32>
      %51 = arith.mulf %17, %50 : vector<16x256xf32>
      %cst_14 = arith.constant dense<0.000000e+00> : vector<256xf32>
      %52 = vector.multi_reduction <add>, %51, %cst_14 [0] : vector<16x256xf32> to vector<256xf32>
      %53 = vector.shape_cast %52 : vector<256xf32> to vector<1x256xf32>
      %54 = arith.mulf %20, %50 : vector<16x256xf32>
      %cst_15 = arith.constant dense<0.000000e+00> : vector<256xf32>
      %55 = vector.multi_reduction <add>, %54, %cst_15 [0] : vector<16x256xf32> to vector<256xf32>
      %56 = vector.shape_cast %55 : vector<256xf32> to vector<1x256xf32>
      %57 = tpu.concatenate %53, %56 in 0 : vector<1x256xf32>, vector<1x256xf32> -> vector<2x256xf32>
      %58 = arith.addf %57, %23 : vector<2x256xf32>
      %c0_16 = arith.constant 0 : index
      %59 = arith.index_cast %26 : i32 to index
      %60 = vector.load %arg6[%c0_16, %59] : memref<2x512xf32, #tpu.memory_space<vmem>>, vector<2x256xf32>
      tpu.vector_store %arg6[%c0_16, %59], %58 {strides = array<i32>} : memref<2x512xf32, #tpu.memory_space<vmem>>, vector<2x256xf32>,
    }
    %c2_i32_12 = arith.constant 2 : i32
    return
  }
  func.func @transform_0(%arg0: i32) -> (i32, i32) {
    %c0_i32 = arith.constant 0 : i32
    %c0_i32_0 = arith.constant 0 : i32
    return %c0_i32, %arg0 : i32, i32
  }
  func.func @transform_1(%arg0: i32) -> (i32, i32) {
    %c0_i32 = arith.constant 0 : i32
    %c0_i32_0 = arith.constant 0 : i32
    %c0_i32_1 = arith.constant 0 : i32
    return %c0_i32, %c0_i32_0 : i32, i32
  }
  func.func @transform_2(%arg0: i32) -> (i32, i32) {
    %c0_i32 = arith.constant 0 : i32
    %c0_i32_0 = arith.constant 0 : i32
    %c0_i32_1 = arith.constant 0 : i32
    return %c0_i32, %c0_i32_0 : i32, i32
  }
  func.func @transform_3(%arg0: i32) -> (i32, i32) {
    %c0_i32 = arith.constant 0 : i32
    %c0_i32_0 = arith.constant 0 : i32
    %c0_i32_1 = arith.constant 0 : i32
    return %c0_i32, %c0_i32_0 : i32, i32
  }
  func.func @transform_4(%arg0: i32) -> (i32, i32) {
    %c0_i32 = arith.constant 0 : i32
    %c0_i32_0 = arith.constant 0 : i32
    %c0_i32_1 = arith.constant 0 : i32
    return %c0_i32, %c0_i32_0 : i32, i32
  }
  func.func @transform_5(%arg0: i32) -> (i32, i32) {
    %c0_i32 = arith.constant 0 : i32
    %c0_i32_0 = arith.constant 0 : i32
    return %c0_i32, %arg0 : i32, i32
  }
}

</mosaic_0001>

<llo_original>
// kernel: snake_ai_forward_t.1
$region0: #{snake_ai_forward_t.1}
  #allocation0 [shape = 'u32[]', space=smem, size = 0x4, offset = 0x4, fixed_abs, tag = 'smem constant byte address 0x4 - core index']
  #allocation1 [shape = 'u32[72,128]{1,0:T(1,128)}', space=vmem, size = 0x9000, scoped, tag = 'internal scratch']
  %s0 = inlined_call_operand.vmem [shape: f32[4,1024], index: 0, kind: input, shape index: {}]
  %s1 = inlined_call_operand.vmem [shape: f32[16,4], index: 1, kind: input, shape index: {}]
  %s2 = inlined_call_operand.vmem [shape: f32[16,1], index: 2, kind: input, shape index: {}]
  %s3 = inlined_call_operand.vmem [shape: f32[16,2], index: 3, kind: input, shape index: {}]
  %s4 = inlined_call_operand.vmem [shape: f32[2,1], index: 4, kind: input, shape index: {}]
  %s5 = inlined_call_operand.hbm [shape: f32[2,1024], index: 5, kind: output, shape index: {}]
  %s6 = sld [smem:[#allocation0]]
  $region60: #{snake_ai_forward_t.1} parent=0
    _
  %s8 = ssub.s32 1, %s6
  %s9 = scalar_select 0, %s8, %s6
  $region1: #{snake_ai_forward_t.1} parent=0
    #allocation2 [shape = 'u8[8192]{0}', space=vmem, size = 0x2000, scoped, tag = 'output window, operand 0']
    #allocation3 [shape = 's32[2]{0}', space=sflag, size = 0x8, scoped, tag = 'scoped memory for snake_ai_forward_t.1']
    %10 = vsyncpa [#allocation3], 0
    %s11 = scalar_lea.sflag [#allocation3], 1
    %12 = vsyncpa %s11, 0
    loop: start=0, step=1, limit=4
    $region2: #{snake_ai_forward_t.1} parent=1 // loop_pre_header
      _
    $region3: #{snake_ai_forward_t.1} parent=1 // loop_header
      %s14 = sphi 0, %s18
      %p15 = scmp.ge.s32.totalorder %s14, 4
      %s24 = sphi 0, %s26
      %s27 = sphi 0, %s24
      %s28 = sphi 0, %s27
      %s44 = sphi 0, %s28
      %s48 = sphi 0, %s48
      %s50 = sphi 0, %s48
      %s51 = sphi 0, %s50
      %s65 = sphi 0, %s51
      %s69 = sphi 0, %s69
      %s71 = sphi 0, %s69
      %s72 = sphi 0, %s71
      %s86 = sphi 0, %s72
      %s90 = sphi 0, %s90
      %s92 = sphi 0, %s90
      %s93 = sphi 0, %s92
      %s107 = sphi 0, %s93
      %s111 = sphi 0, %s111
      %s113 = sphi 0, %s111
      %s114 = sphi 0, %s113
      %s128 = sphi 0, %s114
      %s134 = sphi 0, %s136
      %s137 = sphi 0, %s134
      %s138 = sphi 0, %s137
      %s154 = sphi 0, %s138
    $region4: #{snake_ai_forward_t.1} parent=1 // loop_header_branch
      %17 = sbr.rel (%p15) target = $region8
    $region5: #{snake_ai_forward_t.1} parent=1 // loop_body
      %s19 = ssub.s32 %s14, 1
      %s20 = ssub.s32 %s14, 2
      %s21 = sadd.s32 %s14, 1
      %s22 = ssub.s32 %s14, %s21
      %p23 = scmp.eq.s32.totalorder %s22, 0
      %s25 = sadd.s32 %s24, 1
      %s26 = scalar_select %p23, %s24, %s25
      %p29 = pneg %p23
      %p30 = scmp.eq.s32.totalorder %s14, 1
      %p31 = por %p29, %p30
      %p32 = scmp.ne.s32.totalorder %s24, %s27
      %p33 = scmp.eq.s32.totalorder %s14, 0
      %p34 = por %p32, %p33
      %p35 = scmp.ne.s32.totalorder %s24, %s27
      %p36 = scmp.eq.s32.totalorder %s19, 1
      %p37 = por %p35, %p36
      %p38 = scmp.ne.s32.totalorder %s27, %s28
      %p39 = scmp.eq.s32.totalorder %s19, 0
      %p40 = por %p38, %p39
      %p41 = scmp.ne.s32.totalorder %s27, %s28
      %p42 = scmp.eq.s32.totalorder %s20, 1
      %p43 = por %p41, %p42
      %p45 = scmp.ne.s32.totalorder %s28, %s44
      %p46 = scmp.eq.s32.totalorder %s20, 0
      %p47 = por %p45, %p46
      %s49 = sadd.s32 %s48, 1
      %p52 = scmp.eq.s32.totalorder %s14, 1
      %p53 = scmp.ne.s32.totalorder %s48, %s50
      %p54 = scmp.eq.s32.totalorder %s14, 0
      %p55 = por %p53, %p54
      %p56 = scmp.ne.s32.totalorder %s48, %s50
      %p57 = scmp.eq.s32.totalorder %s19, 1
      %p58 = por %p56, %p57
      %p59 = scmp.ne.s32.totalorder %s50, %s51
      %p60 = scmp.eq.s32.totalorder %s19, 0
      %p61 = por %p59, %p60
      %p62 = scmp.ne.s32.totalorder %s50, %s51
      %p63 = scmp.eq.s32.totalorder %s20, 1
      %p64 = por %p62, %p63
      %p66 = scmp.ne.s32.totalorder %s51, %s65
      %p67 = scmp.eq.s32.totalorder %s20, 0
      %p68 = por %p66, %p67
      %s70 = sadd.s32 %s69, 1
      %p73 = scmp.eq.s32.totalorder %s14, 1
      %p74 = scmp.ne.s32.totalorder %s69, %s71
      %p75 = scmp.eq.s32.totalorder %s14, 0
      %p76 = por %p74, %p75
      %p77 = scmp.ne.s32.totalorder %s69, %s71
      %p78 = scmp.eq.s32.totalorder %s19, 1
      %p79 = por %p77, %p78
      %p80 = scmp.ne.s32.totalorder %s71, %s72
      %p81 = scmp.eq.s32.totalorder %s19, 0
      %p82 = por %p80, %p81
      %p83 = scmp.ne.s32.totalorder %s71, %s72
      %p84 = scmp.eq.s32.totalorder %s20, 1
      %p85 = por %p83, %p84
      %p87 = scmp.ne.s32.totalorder %s72, %s86
      %p88 = scmp.eq.s32.totalorder %s20, 0
      %p89 = por %p87, %p88
      %s91 = sadd.s32 %s90, 1
      %p94 = scmp.eq.s32.totalorder %s14, 1
      %p95 = scmp.ne.s32.totalorder %s90, %s92
      %p96 = scmp.eq.s32.totalorder %s14, 0
      %p97 = por %p95, %p96
      %p98 = scmp.ne.s32.totalorder %s90, %s92
      %p99 = scmp.eq.s32.totalorder %s19, 1
      %p100 = por %p98, %p99
      %p101 = scmp.ne.s32.totalorder %s92, %s93
      %p102 = scmp.eq.s32.totalorder %s19, 0
      %p103 = por %p101, %p102
      %p104 = scmp.ne.s32.totalorder %s92, %s93
      %p105 = scmp.eq.s32.totalorder %s20, 1
      %p106 = por %p104, %p105
      %p108 = scmp.ne.s32.totalorder %s93, %s107
      %p109 = scmp.eq.s32.totalorder %s20, 0
      %p110 = por %p108, %p109
      %s112 = sadd.s32 %s111, 1
      %p115 = scmp.eq.s32.totalorder %s14, 1
      %p116 = scmp.ne.s32.totalorder %s111, %s113
      %p117 = scmp.eq.s32.totalorder %s14, 0
      %p118 = por %p116, %p117
      %p119 = scmp.ne.s32.totalorder %s111, %s113
      %p120 = scmp.eq.s32.totalorder %s19, 1
      %p121 = por %p119, %p120
      %p122 = scmp.ne.s32.totalorder %s113, %s114
      %p123 = scmp.eq.s32.totalorder %s19, 0
      %p124 = por %p122, %p123
      %p125 = scmp.ne.s32.totalorder %s113, %s114
      %p126 = scmp.eq.s32.totalorder %s20, 1
      %p127 = por %p125, %p126
      %p129 = scmp.ne.s32.totalorder %s114, %s128
      %p130 = scmp.eq.s32.totalorder %s20, 0
      %p131 = por %p129, %p130
      %s132 = ssub.s32 %s14, %s21
      %p133 = scmp.eq.s32.totalorder %s132, 0
      %s135 = sadd.s32 %s134, 1
      %s136 = scalar_select %p133, %s134, %s135
      %p139 = pneg %p133
      %p140 = scmp.eq.s32.totalorder %s14, 1
      %p141 = por %p139, %p140
      %p142 = scmp.ne.s32.totalorder %s134, %s137
      %p143 = scmp.eq.s32.totalorder %s14, 0
      %p144 = por %p142, %p143
      %p145 = scmp.ne.s32.totalorder %s134, %s137
      %p146 = scmp.eq.s32.totalorder %s19, 1
      %p147 = por %p145, %p146
      %p148 = scmp.ne.s32.totalorder %s137, %s138
      %p149 = scmp.eq.s32.totalorder %s19, 0
      %p150 = por %p148, %p149
      %p151 = scmp.ne.s32.totalorder %s137, %s138
      %p152 = scmp.eq.s32.totalorder %s20, 1
      %p153 = por %p151, %p152
      %p155 = scmp.ne.s32.totalorder %s138, %s154
      %p156 = scmp.eq.s32.totalorder %s20, 0
      %p157 = por %p155, %p156
      %p158 = scmp.le.s32.totalorder 1, %s14
      %p159 = scmp.lt.s32.totalorder %s14, 3
      %p160 = pnand %p158, %p159
      %p161 = pneg %p160
      // Predicated region
      $region9: #{snake_ai_forward_t.1} parent=5 // pred_check
        _
      $region10: #{snake_ai_forward_t.1} parent=5 // pred_check_branch
        %163 = sbr.rel (%p160) target = $region12
      $region11: #{snake_ai_forward_t.1} parent=5 // pred_region
        %s164 = ssub.s32 %s14, 1
        // Predicated region
        $region13: #{snake_ai_forward_t.1} parent=11 // pred_check
          %p165 = pneg %p61
        $region14: #{snake_ai_forward_t.1} parent=11 // pred_check_branch
          %167 = sbr.rel (%p165) target = $region16
        $region15: #{snake_ai_forward_t.1} parent=11 // pred_region
          _
        $region16: #{snake_ai_forward_t.1} parent=11 // pred_fallthru
          _
        // Predicated region
        $region17: #{snake_ai_forward_t.1} parent=11 // pred_check
          %p168 = pneg %p82
        $region18: #{snake_ai_forward_t.1} parent=11 // pred_check_branch
          %170 = sbr.rel (%p168) target = $region20
        $region19: #{snake_ai_forward_t.1} parent=11 // pred_region
          _
        $region20: #{snake_ai_forward_t.1} parent=11 // pred_fallthru
          _
        // Predicated region
        $region21: #{snake_ai_forward_t.1} parent=11 // pred_check
          %p171 = pneg %p103
        $region22: #{snake_ai_forward_t.1} parent=11 // pred_check_branch
          %173 = sbr.rel (%p171) target = $region24
        $region23: #{snake_ai_forward_t.1} parent=11 // pred_region
          _
        $region24: #{snake_ai_forward_t.1} parent=11 // pred_fallthru
          _
        // Predicated region
        $region25: #{snake_ai_forward_t.1} parent=11 // pred_check
          %p174 = pneg %p124
        $region26: #{snake_ai_forward_t.1} parent=11 // pred_check_branch
          %176 = sbr.rel (%p174) target = $region28
        $region27: #{snake_ai_forward_t.1} parent=11 // pred_region
          _
        $region28: #{snake_ai_forward_t.1} parent=11 // pred_fallthru
          _
      $region12: #{snake_ai_forward_t.1} parent=5 // pred_fallthru
        _
      %p177 = scmp.lt.s32.totalorder %s14, 2
      // Predicated region
      $region29: #{snake_ai_forward_t.1} parent=5 // pred_check
        %p178 = pneg %p177
      $region30: #{snake_ai_forward_t.1} parent=5 // pred_check_branch
        %180 = sbr.rel (%p178) target = $region32
      $region31: #{snake_ai_forward_t.1} parent=5 // pred_region
        // Predicated region
        $region33: #{snake_ai_forward_t.1} parent=31 // pred_check
          %p181 = pneg %p34
        $region34: #{snake_ai_forward_t.1} parent=31 // pred_check_branch
          %183 = sbr.rel (%p181) target = $region36
        $region35: #{snake_ai_forward_t.1} parent=31 // pred_region
          %s184 = smul.u32 4, %s14
          %p185 = scmp.lt.s32.totalorder %s184, 7
          %s186 = scalar_select %p185, %s184, 7
          %s187 = smul.addr %s186, 4
          %s188 = scalar_lea.vmem %s0, %s187
          %s189 = smul.u32 4, %s14
        $region36: #{snake_ai_forward_t.1} parent=31 // pred_fallthru
          _
      $region32: #{snake_ai_forward_t.1} parent=5 // pred_fallthru
        _
      %p190 = scmp.le.s32.totalorder 1, %s14
      %p191 = scmp.lt.s32.totalorder %s14, 3
      %p192 = pnand %p190, %p191
      %p193 = pneg %p192
      // Predicated region
      $region37: #{snake_ai_forward_t.1} parent=5 // pred_check
        _
      $region38: #{snake_ai_forward_t.1} parent=5 // pred_check_branch
        %195 = sbr.rel (%p192) target = $region40
      $region39: #{snake_ai_forward_t.1} parent=5 // pred_region
        %s196 = ssub.s32 %s14, 1
        %s197 = smul.u32 4, %s19
        %p198 = scmp.lt.s32.totalorder %s197, 7
        %s199 = scalar_select %p198, %s197, 7
        %s200 = smul.addr %s199, 4
        %s201 = scalar_lea.vmem %s0, %s200
        %p202 = pneg %p40
        %p203 = pneg %p37
        %p204 = pneg %p61
        %p205 = pneg %p58
        %p206 = pneg %p82
        %p207 = pneg %p79
        %p208 = pneg %p103
        %p209 = pneg %p100
        %p210 = pneg %p124
        %p211 = pneg %p121
        %p212 = pneg %p150
        %p213 = pneg %p147
        %s214 = sand.u32 %s137, 1
        %s215 = scalar_lea.sflag [#allocation3], %s214
        %s216 = sand.u32 %s137, 1
        %s217 = smul.addr %s216, 8
        %s218 = scalar_lea.vmem [#allocation2], %s217
        %s219 = smul.u32 4, %s19
        %p220 = scmp.lt.s32.totalorder %s219, 7
        %s221 = scalar_select %p220, %s219, 7
        %s222 = smul.addr %s221, 4
        %s223 = scalar_lea.vmem %s0, %s222
        %s224 = smul.u32 4, %s19
        %s225 = smul.u32 4, %s19
        %v226 = vld [vmem:[%s1] sm:$0xff]
        %v227 = vld [vmem:[%s1 + $0x8] sm:$0xff]
        %229 = vset.pattern.permute.xlu0 0
        %230 = vperm.xlu0 %229, %v226
        %v231 = vpop.permute.xlu0 %230
        %234 = vset.pattern.permute.xlu0 0
        %235 = vperm.xlu0 %234, %v227
        %v236 = vpop.permute.xlu0 %235
        %238 = vset.pattern.permute.xlu0 1
        %239 = vperm.xlu0 %238, %v226
        %v240 = vpop.permute.xlu0 %239
        %242 = vset.pattern.permute.xlu0 1
        %243 = vperm.xlu0 %242, %v227
        %v244 = vpop.permute.xlu0 %243
        %246 = vset.pattern.permute.xlu0 2
        %247 = vperm.xlu0 %246, %v226
        %v248 = vpop.permute.xlu0 %247
        %250 = vset.pattern.permute.xlu0 2
        %251 = vperm.xlu0 %250, %v227
        %v252 = vpop.permute.xlu0 %251
        %254 = vset.pattern.permute.xlu0 3
        %255 = vperm.xlu0 %254, %v226
        %v256 = vpop.permute.xlu0 %255
        %258 = vset.pattern.permute.xlu0 3
        %259 = vperm.xlu0 %258, %v227
        %v260 = vpop.permute.xlu0 %259
        %v262 = vld [vmem:[%s2] sm:$0xff]
        %v263 = vld [vmem:[%s2 + $0x8] sm:$0xff]
        %265 = vset.pattern.permute.xlu0 0
        %266 = vperm.xlu0 %265, %v262
        %v267 = vpop.permute.xlu0 %266
        %270 = vset.pattern.permute.xlu0 0
        %271 = vperm.xlu0 %270, %v263
        %v272 = vpop.permute.xlu0 %271
        %v274 = vld [vmem:[%s3] sm:$0xff]
        %v275 = vld [vmem:[%s3 + $0x8] sm:$0xff]
        %277 = vset.pattern.permute.xlu0 0
        %278 = vperm.xlu0 %277, %v274
        %v279 = vpop.permute.xlu0 %278
        %282 = vset.pattern.permute.xlu0 0
        %283 = vperm.xlu0 %282, %v275
        %v284 = vpop.permute.xlu0 %283
        %286 = vset.pattern.permute.xlu0 1
        %287 = vperm.xlu0 %286, %v274
        %v288 = vpop.permute.xlu0 %287
        %290 = vset.pattern.permute.xlu0 1
        %291 = vperm.xlu0 %290, %v275
        %v292 = vpop.permute.xlu0 %291
        %v294 = vld [vmem:[%s4] sm:$0x3]
        %296 = vset.pattern.permute.xlu0 0
        %297 = vperm.xlu0 %296, %v294
        %v298 = vpop.permute.xlu0 %297
        loop: start=0, step=1, limit=2
        $region41: #{snake_ai_forward_t.1} parent=39 // loop_pre_header
          _
        $region42: #{snake_ai_forward_t.1} parent=39 // loop_header
          %s301 = sphi 0, %s305
          %p302 = scmp.ge.s32.totalorder %s301, 2
        $region43: #{snake_ai_forward_t.1} parent=39 // loop_header_branch
          %304 = sbr.rel (%p302) target = $region47
        $region44: #{snake_ai_forward_t.1} parent=39 // loop_body
          %s306 = smul.u32 %s301, 256
          %s307 = sshra.s32 %s306, 7
          %s308 = sand.u32 %s306, 127
          %s309 = smul.addr %s307, 4
          %s310 = scalar_lea.vmem %s223, %s309
          %v311 = vld [vmem:[%s310] sm:$0xff]
          %v313 = vperm.slane %v311, 0
          %v314 = vperm.slane %v311, 4
          %v317 = vperm.slane %v313, 0
          %v318 = vperm.slane %v314, 0
          %v319 = vmul.f32 %v231, %v317
          %v320 = vmul.f32 %v231, %v318
          %v321 = vmul.f32 %v236, %v317
          %v322 = vmul.f32 %v236, %v318
          %v323 = vadd.f32 %v267, %v319
          %v324 = vadd.f32 %v267, %v320
          %v325 = vadd.f32 %v272, %v321
          %v326 = vadd.f32 %v272, %v322
          %v327 = vperm.slane %v311, 1
          %v328 = vperm.slane %v311, 5
          %v331 = vperm.slane %v327, 1
          %v332 = vperm.slane %v328, 1
          %v333 = vmul.f32 %v240, %v331
          %v334 = vmul.f32 %v240, %v332
          %v335 = vmul.f32 %v244, %v331
          %v336 = vmul.f32 %v244, %v332
          %v337 = vadd.f32 %v323, %v333
          %v338 = vadd.f32 %v324, %v334
          %v339 = vadd.f32 %v325, %v335
          %v340 = vadd.f32 %v326, %v336
          %v341 = vperm.slane %v311, 2
          %v342 = vperm.slane %v311, 6
          %v345 = vperm.slane %v341, 2
          %v346 = vperm.slane %v342, 2
          %v347 = vmul.f32 %v248, %v345
          %v348 = vmul.f32 %v248, %v346
          %v349 = vmul.f32 %v252, %v345
          %v350 = vmul.f32 %v252, %v346
          %v351 = vadd.f32 %v337, %v347
          %v352 = vadd.f32 %v338, %v348
          %v353 = vadd.f32 %v339, %v349
          %v354 = vadd.f32 %v340, %v350
          %v355 = vperm.slane %v311, 3
          %v356 = vperm.slane %v311, 7
          %v359 = vperm.slane %v355, 3
          %v360 = vperm.slane %v356, 3
          %v361 = vmul.f32 %v256, %v359
          %v362 = vmul.f32 %v256, %v360
          %v363 = vmul.f32 %v260, %v359
          %v364 = vmul.f32 %v260, %v360
          %v365 = vadd.f32 %v351, %v361
          %v366 = vadd.f32 %v352, %v362
          %v367 = vadd.f32 %v353, %v363
          %v368 = vadd.f32 %v354, %v364
          %v369 = vmax.f32 %v365, 0.0
          %v370 = vmax.f32 %v366, 0.0
          %v371 = vmax.f32 %v367, 0.0
          %v372 = vmax.f32 %v368, 0.0
          %v373 = vmul.f32 %v279, %v369
          %v374 = vmul.f32 %v279, %v370
          %v375 = vmul.f32 %v284, %v371
          %v376 = vmul.f32 %v284, %v372
          %v377 = vadd.f32 %v373, %v375
          %v378 = vrot.slane %v377, 4
          %v379 = vadd.f32 %v377, %v378
          %v380 = vrot.slane %v379, 2
          %v381 = vadd.f32 %v379, %v380
          %v382 = vrot.slane %v381, 1
          %v383 = vadd.f32 %v381, %v382
          %v384 = vadd.f32 %v374, %v376
          %v385 = vrot.slane %v384, 4
          %v386 = vadd.f32 %v384, %v385
          %v387 = vrot.slane %v386, 2
          %v388 = vadd.f32 %v386, %v387
          %v389 = vrot.slane %v388, 1
          %v390 = vadd.f32 %v388, %v389
          %v391 = vmul.f32 %v288, %v369
          %v392 = vmul.f32 %v288, %v370
          %v393 = vmul.f32 %v292, %v371
          %v394 = vmul.f32 %v292, %v372
          %v395 = vadd.f32 %v391, %v393
          %v396 = vrot.slane %v395, 4
          %v397 = vadd.f32 %v395, %v396
          %v398 = vrot.slane %v397, 2
          %v399 = vadd.f32 %v397, %v398
          %v400 = vrot.slane %v399, 1
          %v401 = vadd.f32 %v399, %v400
          %v402 = vadd.f32 %v392, %v394
          %v403 = vrot.slane %v402, 4
          %v404 = vadd.f32 %v402, %v403
          %v405 = vrot.slane %v404, 2
          %v406 = vadd.f32 %v404, %v405
          %v407 = vrot.slane %v406, 1
          %v408 = vadd.f32 %v406, %v407
          %vm409 = vcmask 1040384
          %v410 = vsel %vm409, %v383, %v401
          %v411 = vsel %vm409, %v390, %v408
          %v412 = vadd.f32 %v410, %v298
          %v413 = vadd.f32 %v411, %v298
          %v416 = vrot.slane %v413, 6
          %vm417 = vcmask 1041408
          %v418 = vsel %vm417, %v412, %v416
          %s420 = smul.addr %s307, 2
          %s421 = scalar_lea.vmem %s218, %s420 [#allocation2]
          %422 = vst [vmem:[%s421] sm:$0xf] %v418
        $region45: #{snake_ai_forward_t.1} parent=39 // loop_footer
          %s305 = sadd.s32 1, %s301
        $region46: #{snake_ai_forward_t.1} parent=39 // loop_footer_branch
          %300 = sbr.rel target = $region42
        $region47: #{snake_ai_forward_t.1} parent=39 // loop_exit
          _
        %s423 = sand.u32 %s137, 1
        %s424 = scalar_lea.sflag [#allocation3], %s423
        %s425 = sand.u32 %s137, 1
        %s426 = smul.addr %s425, 8
        %s427 = scalar_lea.vmem [#allocation2], %s426
        // Predicated region
        $region48: #{snake_ai_forward_t.1} parent=39 // pred_check
          %p428 = pneg %p147
        $region49: #{snake_ai_forward_t.1} parent=39 // pred_check_branch
          %430 = sbr.rel (%p428) target = $region51
        $region50: #{snake_ai_forward_t.1} parent=39 // pred_region
          %s431 = smul.u32 4, %s19
          %433 = vsyncadd %s424, 0
          %s434 = smul.addr %s431, 2
          %s435 = scalar_lea.hbm %s5, %s434
          %s437 = sshll.u32 %s427, 4
          %s438 = int_to_ptr.vmem [resolvable:$true] %s437
          %s439 = sshll.u32 %s435, 4
          %s440 = int_to_ptr.hbm [resolvable:$true] %s439
          %442 = dma.vmem_to_hbm [thread:$0]  %s438, 128, %s440, %s424
        $region51: #{snake_ai_forward_t.1} parent=39 // pred_fallthru
          _
      $region40: #{snake_ai_forward_t.1} parent=5 // pred_fallthru
        _
      %p443 = scmp.le.s32.totalorder 2, %s14
      // Predicated region
      $region52: #{snake_ai_forward_t.1} parent=5 // pred_check
        %p444 = pneg %p443
      $region53: #{snake_ai_forward_t.1} parent=5 // pred_check_branch
        %446 = sbr.rel (%p444) target = $region55
      $region54: #{snake_ai_forward_t.1} parent=5 // pred_region
        %s447 = ssub.s32 %s14, 2
        // Predicated region
        $region56: #{snake_ai_forward_t.1} parent=54 // pred_check
          %p448 = pneg %p153
        $region57: #{snake_ai_forward_t.1} parent=54 // pred_check_branch
          %450 = sbr.rel (%p448) target = $region59
        $region58: #{snake_ai_forward_t.1} parent=54 // pred_region
          %s451 = sand.u32 %s138, 1
          %s452 = scalar_lea.sflag [#allocation3], %s451
          %s453 = sand.u32 %s138, 1
          %s454 = smul.addr %s453, 8
          %s455 = scalar_lea.vmem [#allocation2], %s454
          %457 = dma.done %s452, 128
        $region59: #{snake_ai_forward_t.1} parent=54 // pred_fallthru
          _
      $region55: #{snake_ai_forward_t.1} parent=5 // pred_fallthru
        _
    $region6: #{snake_ai_forward_t.1} parent=1 // loop_footer
      %s18 = sadd.s32 1, %s14
    $region7: #{snake_ai_forward_t.1} parent=1 // loop_footer_branch
      %13 = sbr.rel target = $region3
    $region8: #{snake_ai_forward_t.1} parent=1 // loop_exit
      _
    %458 = vsyncpa [#allocation3], 1
    %s459 = scalar_lea.sflag [#allocation3], 1
    %460 = vsyncpa %s459, 1

</llo_original>
